<compile_context>
chip_gen: v7x
topology: tpu7x:2x2x1
jax: 0.10.0
libtpu: 0.0.40
codegen_flags: <defaults>
</compile_context>

<pallas_src>
import functools

import jax
import jax.numpy as jnp
from jax import lax
from jax.experimental import pallas as pl
from jax.experimental.pallas import tpu as pltpu


def rnd_kernel(x_ref, w1_ref, b1_ref, w2_ref, b2_ref, out_ref, *, bf16_elementwise):
    # x_ref  : [TB, D_in] f32 or bf16 (batch in sublanes)
    # w1_ref : [2H, D_in] bf16    b1_ref : [2H, 1] f32
    # w2_ref : [H, 2H]    bf16    b2_ref : [H, 1]  f32
    # out_ref: [1, TB]    f32     (lane-dense per-sample MSE row)
    x = x_ref[...].astype(jnp.bfloat16)            # no-op when x is already bf16

    # Fused layer 1 of both nets (rows [0:H]=predictor, [H:2H]=target).
    # Contract on D_in of BOTH operands -> batch stays in lanes: [2H, TB].
    h = lax.dot_general(w1_ref[...], x, (((1,), (1,)), ((), ())),
                        preferred_element_type=jnp.float32)

    if bf16_elementwise:
        # v6e/v7x: bf16 VALU -> bias + ReLU at 2 elems/lane-op.
        hb = jnp.maximum(h.astype(jnp.bfloat16) + b1_ref[...].astype(jnp.bfloat16), 0.0)
    else:
        # v5e and older: keep elementwise in f32 (no bf16 VPU), cast only for the MXU.
        hb = jnp.maximum(h + b1_ref[...], 0.0).astype(jnp.bfloat16)

    # Fused layer 2 producing (pred - target) directly: W2f = [Wp2 | -Wt2].
    diff = jnp.dot(w2_ref[...], hb, preferred_element_type=jnp.float32) + b2_ref[...]

    # Per-sample MSE over the hidden dim (sublane reduce -> lane-dense row).
    out_ref[...] = jnp.mean(diff * diff, axis=0, keepdims=True)          # [1, TB]


def _vmem_limit_bytes(d_in, hidden, tb, x_itemsize):
    """Footprint-based scoped-VMEM request (guards v5e's 16 MiB / v7x's 32 MiB defaults)."""
    x_tiles = 2 * tb * d_in * x_itemsize                         # double-buffered x blocks
    out_tiles = 2 * tb * 4                                       # double-buffered out rows
    inter = tb * (2 * hidden * 4 + 2 * hidden * 2 + hidden * 4)  # h f32 + h bf16 + diff f32
    weights = 2 * (2 * hidden * d_in * 2 + 2 * hidden * 4
                   + hidden * 2 * hidden * 2 + hidden * 4)       # residents (worst-case 2x)
    need = x_tiles + out_tiles + inter + weights
    return int(min(56 << 20, max(32 << 20, 2 * need)))           # stay under v7x's 64 MiB


def rnd_forward(x, params, *, tb=None, bf16_elementwise=None):
    """x: [B, D_in] (f32 or bf16 - bf16 halves the per-step DMA), params from fuse_params.
    Returns per-sample intrinsic reward [B] f32."""
    B, d_in = x.shape
    w1, b1, w2, b2 = params["w1"], params["b1"], params["w2"], params["b2"]
    hidden = w2.shape[0]

    if bf16_elementwise is None:
        kind = jax.devices()[0].device_kind.lower()
        bf16_elementwise = not any(v in kind for v in ("v2", "v3", "v4", "v5"))

    # Batch tile: amortize per-step overhead (grow toward 2048) but keep >= 4 grid
    # steps so v7x megacore sharding has work for both cores.
    if tb is None:
        tb = int(min(2048, max(128, 128 * pl.cdiv(pl.cdiv(B, 4), 128))))
    else:
        tb = int(128 * pl.cdiv(tb, 128))
    if tb >= B:
        tb = B                     # single full-batch tile (block == full dim is legal)
    nb = pl.cdiv(B, tb)

    resident = lambda a: pl.BlockSpec(a.shape, lambda i: (0, 0))  # DMA'd once, VMEM-resident

    kernel = functools.partial(rnd_kernel, bf16_elementwise=bool(bf16_elementwise))
    out = pl.pallas_call(
        kernel,
        out_shape=jax.ShapeDtypeStruct((1, B), jnp.float32),
        grid=(nb,),
        in_specs=[
            pl.BlockSpec((tb, d_in), lambda i: (i, 0)),   # x tile: pipelined over batch
            resident(w1), resident(b1), resident(w2), resident(b2),
        ],
        out_specs=pl.BlockSpec((1, tb), lambda i: (0, i)),  # lane-dense output row
        compiler_params=pltpu.CompilerParams(
            dimension_semantics=("parallel",),              # megacore sharding on v7x
            vmem_limit_bytes=_vmem_limit_bytes(d_in, hidden, tb, x.dtype.itemsize),
        ),
    )(x, w1, b1, w2, b2)
    return out[0]


def init_params(key, input_dim, hidden_dim):
    """Raw per-network params in PyTorch nn.Linear layout (weights [out, in])."""
    ks = jax.random.split(key, 8)
    s_in = 1.0 / jnp.sqrt(jnp.float32(input_dim))
    s_h = 1.0 / jnp.sqrt(jnp.float32(hidden_dim))
    u = lambda k, shape, s: jax.random.uniform(k, shape, jnp.float32, -s, s)
    return {
        # target net (frozen in torch; forward math identical)
        "wt1": u(ks[0], (hidden_dim, input_dim), s_in), "bt1": u(ks[1], (hidden_dim,), s_in),
        "wt2": u(ks[2], (hidden_dim, hidden_dim), s_h), "bt2": u(ks[3], (hidden_dim,), s_h),
        # predictor net
        "wp1": u(ks[4], (hidden_dim, input_dim), s_in), "bp1": u(ks[5], (hidden_dim,), s_in),
        "wp2": u(ks[6], (hidden_dim, hidden_dim), s_h), "bp2": u(ks[7], (hidden_dim,), s_h),
    }


def fuse_params(raw):
    """Fuse predictor+target into two matmuls; weights bf16 (MXU), biases f32."""
    w1 = jnp.concatenate([raw["wp1"], raw["wt1"]], axis=0).astype(jnp.bfloat16)   # [2H, D_in]
    b1 = jnp.concatenate([raw["bp1"], raw["bt1"]])[:, None]                       # [2H, 1]
    w2 = jnp.concatenate([raw["wp2"], -raw["wt2"]], axis=1).astype(jnp.bfloat16)  # [H, 2H]
    b2 = (raw["bp2"] - raw["bt2"])[:, None]                                       # [H, 1]
    return {"w1": w1, "b1": b1, "w2": w2, "b2": b2}


def rnd_reference(x, raw):
    """Pure-JAX reference of the original two-network forward, matching the kernel's
    precision model (bf16 matmul operands, f32 accumulation)."""
    bf = jnp.bfloat16
    dot = lambda a, b: jnp.dot(a.astype(bf), b.astype(bf),
                               preferred_element_type=jnp.float32)
    h_t = jnp.maximum(dot(x, raw["wt1"].T) + raw["bt1"], 0.0)
    t_out = dot(h_t, raw["wt2"].T) + raw["bt2"]
    h_p = jnp.maximum(dot(x, raw["wp1"].T) + raw["bp1"], 0.0)
    p_out = dot(h_p, raw["wp2"].T) + raw["bp2"]
    return jnp.mean((p_out - t_out) ** 2, axis=1)


if __name__ == "__main__":
    key = jax.random.PRNGKey(0)
    k_x, k_p = jax.random.split(key)

    # Small demo shapes consistent with the module; auto TB=128 -> grid=(4,), which
    # exercises the batch pipeline and v7x megacore sharding.  For real RND batches
    # TB auto-grows toward 2048.
    B, INPUT_DIM, HIDDEN_DIM = 512, 32, 128
    x = jax.random.normal(k_x, (B, INPUT_DIM), jnp.float32)
    raw = init_params(k_p, INPUT_DIM, HIDDEN_DIM)
    params = fuse_params(raw)

    out = rnd_forward(x, params)
    jax.block_until_ready(out)

    ref = rnd_reference(x, raw)
    assert out.shape == (B,)
    assert jnp.allclose(out, ref, rtol=3e-2, atol=1e-3), (out, ref)

    print("KERNEL_OK")
</pallas_src>

<mosaic_0001>
module attributes {stable_mosaic.version = 11 : i64} {
  func.func @rnd_kernel(%arg0: i32, %arg1: memref<128x32xf32, #tpu.memory_space<vmem>>, %arg2: memref<256x32xbf16, #tpu.memory_space<vmem>>, %arg3: memref<256x1xf32, #tpu.memory_space<vmem>>, %arg4: memref<128x256xbf16, #tpu.memory_space<vmem>>, %arg5: memref<128x1xf32, #tpu.memory_space<vmem>>, %arg6: memref<1x128xf32, #tpu.memory_space<vmem>>) attributes {dimension_semantics = [#tpu.dimension_semantics<parallel>], iteration_bounds = array<i64: 4>, scalar_prefetch = 0 : i64, scratch_operands = 0 : i64, tpu.core_type = #tpu.core_type<tc>, window_params = [{transform_indices = @transform_0, window_bounds = array<i64: 128, 32>}, {pipeline_mode = #tpu.pipeline_mode<synchronous>, transform_indices = @transform_1, window_bounds = array<i64: 256, 32>}, {pipeline_mode = #tpu.pipeline_mode<synchronous>, transform_indices = @transform_2, window_bounds = array<i64: 256, 1>}, {pipeline_mode = #tpu.pipeline_mode<synchronous>, transform_indices = @transform_3, window_bounds = array<i64: 128, 256>}, {pipeline_mode = #tpu.pipeline_mode<synchronous>, transform_indices = @transform_4, window_bounds = array<i64: 128, 1>}, {transform_indices = @transform_5, window_bounds = array<i64: 1, 128>}]} {
    %c0 = arith.constant 0 : index
    %c0_0 = arith.constant 0 : index
    %0 = vector.load %arg1[%c0, %c0_0] : memref<128x32xf32, #tpu.memory_space<vmem>>, vector<128x32xf32>
    %1 = arith.truncf %0 : vector<128x32xf32> to vector<128x32xbf16>
    %c0_1 = arith.constant 0 : index
    %c0_2 = arith.constant 0 : index
    %2 = vector.load %arg2[%c0_1, %c0_2] : memref<256x32xbf16, #tpu.memory_space<vmem>>, vector<256x32xbf16>
    %cst = arith.constant dense<0.000000e+00> : vector<256x128xf32>
    %3 = tpu.matmul %2, %1, %cst {dimension_numbers = #tpu.dot_dimension_numbers<[1], [1], [0], [0], [0, 0, 1, 0], [], []>} : vector<256x32xbf16>, vector<128x32xbf16>, vector<256x128xf32> -> vector<256x128xf32>
    %4 = arith.truncf %3 : vector<256x128xf32> to vector<256x128xbf16>
    %c0_3 = arith.constant 0 : index
    %c0_4 = arith.constant 0 : index
    %5 = vector.load %arg3[%c0_3, %c0_4] : memref<256x1xf32, #tpu.memory_space<vmem>>, vector<256x1xf32>
    %6 = arith.truncf %5 : vector<256x1xf32> to vector<256x1xbf16>
    %7 = vector.broadcast %6 : vector<256x1xbf16> to vector<256x128xbf16>
    %8 = arith.addf %4, %7 : vector<256x128xbf16>
    %cst_5 = arith.constant 0.000000e+00 : bf16
    %9 = vector.broadcast %cst_5 : bf16 to vector<256x128xbf16>
    %10 = arith.maximumf %8, %9 : vector<256x128xbf16>
    %c0_6 = arith.constant 0 : index
    %c0_7 = arith.constant 0 : index
    %11 = vector.load %arg4[%c0_6, %c0_7] : memref<128x256xbf16, #tpu.memory_space<vmem>>, vector<128x256xbf16>
    %cst_8 = arith.constant dense<0.000000e+00> : vector<128x128xf32>
    %12 = tpu.matmul %11, %10, %cst_8 {dimension_numbers = #tpu.dot_dimension_numbers<[1], [0], [0], [1], [0, 0, 1, 1], [], []>} : vector<128x256xbf16>, vector<256x128xbf16>, vector<128x128xf32> -> vector<128x128xf32>
    %c0_9 = arith.constant 0 : index
    %c0_10 = arith.constant 0 : index
    %13 = vector.load %arg5[%c0_9, %c0_10] : memref<128x1xf32, #tpu.memory_space<vmem>>, vector<128x1xf32>
    %14 = vector.broadcast %13 : vector<128x1xf32> to vector<128x128xf32>
    %15 = arith.addf %12, %14 : vector<128x128xf32>
    %16 = arith.mulf %15, %15 : vector<128x128xf32>
    %cst_11 = arith.constant dense<0.000000e+00> : vector<128xf32>
    %17 = vector.multi_reduction <add>, %16, %cst_11 [0] : vector<128x128xf32> to vector<128xf32>
    %18 = vector.shape_cast %17 : vector<128xf32> to vector<1x128xf32>
    %cst_12 = arith.constant 1.280000e+02 : f32
    %19 = vector.broadcast %cst_12 : f32 to vector<1x128xf32>
    %20 = arith.divf %18, %19 : vector<1x128xf32>
    %c0_13 = arith.constant 0 : index
    %c0_14 = arith.constant 0 : index
    %21 = vector.load %arg6[%c0_13, %c0_14] : memref<1x128xf32, #tpu.memory_space<vmem>>, vector<1x128xf32>
    tpu.vector_store %arg6[%c0_13, %c0_14], %20 {strides = array<i32>} : memref<1x128xf32, #tpu.memory_space<vmem>>, vector<1x128xf32>,
    return
  }
  func.func @transform_0(%arg0: i32) -> (i32, i32) {
    %c0_i32 = arith.constant 0 : i32
    %c0_i32_0 = arith.constant 0 : i32
    return %arg0, %c0_i32 : i32, i32
  }
  func.func @transform_1(%arg0: i32) -> (i32, i32) {
    %c0_i32 = arith.constant 0 : i32
    %c0_i32_0 = arith.constant 0 : i32
    %c0_i32_1 = arith.constant 0 : i32
    return %c0_i32, %c0_i32_0 : i32, i32
  }
  func.func @transform_2(%arg0: i32) -> (i32, i32) {
    %c0_i32 = arith.constant 0 : i32
    %c0_i32_0 = arith.constant 0 : i32
    %c0_i32_1 = arith.constant 0 : i32
    return %c0_i32, %c0_i32_0 : i32, i32
  }
  func.func @transform_3(%arg0: i32) -> (i32, i32) {
    %c0_i32 = arith.constant 0 : i32
    %c0_i32_0 = arith.constant 0 : i32
    %c0_i32_1 = arith.constant 0 : i32
    return %c0_i32, %c0_i32_0 : i32, i32
  }
  func.func @transform_4(%arg0: i32) -> (i32, i32) {
    %c0_i32 = arith.constant 0 : i32
    %c0_i32_0 = arith.constant 0 : i32
    %c0_i32_1 = arith.constant 0 : i32
    return %c0_i32, %c0_i32_0 : i32, i32
  }
  func.func @transform_5(%arg0: i32) -> (i32, i32) {
    %c0_i32 = arith.constant 0 : i32
    %c0_i32_0 = arith.constant 0 : i32
    return %c0_i32, %arg0 : i32, i32
  }
}

</mosaic_0001>

<llo_original>
// kernel: tpu_custom_call.1
$region0: #{tpu_custom_call.1}
  #allocation0 [shape = 'u32[]', space=smem, size = 0x4, offset = 0x4, fixed_abs, tag = 'smem constant byte address 0x4 - core index']
  #allocation1 [shape = 'u32[144,128]{1,0:T(1,128)}', space=vmem, size = 0x12000, scoped, tag = 'internal scratch']
  %s0 = inlined_call_operand.vmem [shape: f32[512,32], index: 0, kind: input, shape index: {}]
  %s1 = inlined_call_operand.vmem [shape: bf16[256,32], index: 1, kind: input, shape index: {}]
  %s2 = inlined_call_operand.vmem [shape: f32[256,1], index: 2, kind: input, shape index: {}]
  %s3 = inlined_call_operand.vmem [shape: bf16[128,256], index: 3, kind: input, shape index: {}]
  %s4 = inlined_call_operand.vmem [shape: f32[128,1], index: 4, kind: input, shape index: {}]
  %s5 = inlined_call_operand.hbm [shape: f32[1,512], index: 5, kind: output, shape index: {}]
  %s6 = sld [smem:[#allocation0]]
  $region53: #{tpu_custom_call.1} parent=0
    _
  %s8 = ssub.s32 1, %s6
  %s9 = scalar_select 0, %s8, %s6
  $region1: #{tpu_custom_call.1} parent=0
    #allocation2 [shape = 'u8[1024]{0}', space=vmem, size = 0x400, scoped, tag = 'output window, operand 0']
    #allocation3 [shape = 's32[2]{0}', space=sflag, size = 0x8, scoped, tag = 'scoped memory for tpu_custom_call.1']
    %10 = vsyncpa [#allocation3], 0
    %s11 = scalar_lea.sflag [#allocation3], 1
    %12 = vsyncpa %s11, 0
    loop: start=0, step=1, limit=6
    $region2: #{tpu_custom_call.1} parent=1 // loop_pre_header
      _
    $region3: #{tpu_custom_call.1} parent=1 // loop_header
      %s14 = sphi 0, %s18
      %p15 = scmp.ge.s32.totalorder %s14, 6
      %s24 = sphi 0, %s26
      %s27 = sphi 0, %s24
      %s28 = sphi 0, %s27
      %s44 = sphi 0, %s28
      %s48 = sphi 0, %s48
      %s50 = sphi 0, %s48
      %s51 = sphi 0, %s50
      %s65 = sphi 0, %s51
      %s69 = sphi 0, %s69
      %s71 = sphi 0, %s69
      %s72 = sphi 0, %s71
      %s86 = sphi 0, %s72
      %s90 = sphi 0, %s90
      %s92 = sphi 0, %s90
      %s93 = sphi 0, %s92
      %s107 = sphi 0, %s93
      %s111 = sphi 0, %s111
      %s113 = sphi 0, %s111
      %s114 = sphi 0, %s113
      %s128 = sphi 0, %s114
      %s134 = sphi 0, %s136
      %s137 = sphi 0, %s134
      %s138 = sphi 0, %s137
      %s154 = sphi 0, %s138
    $region4: #{tpu_custom_call.1} parent=1 // loop_header_branch
      %17 = sbr.rel (%p15) target = $region8
    $region5: #{tpu_custom_call.1} parent=1 // loop_body
      %s19 = ssub.s32 %s14, 1
      %s20 = ssub.s32 %s14, 2
      %s21 = sadd.s32 %s14, 1
      %s22 = ssub.s32 %s14, %s21
      %p23 = scmp.eq.s32.totalorder %s22, 0
      %s25 = sadd.s32 %s24, 1
      %s26 = scalar_select %p23, %s24, %s25
      %p29 = pneg %p23
      %p30 = scmp.eq.s32.totalorder %s14, 3
      %p31 = por %p29, %p30
      %p32 = scmp.ne.s32.totalorder %s24, %s27
      %p33 = scmp.eq.s32.totalorder %s14, 0
      %p34 = por %p32, %p33
      %p35 = scmp.ne.s32.totalorder %s24, %s27
      %p36 = scmp.eq.s32.totalorder %s19, 3
      %p37 = por %p35, %p36
      %p38 = scmp.ne.s32.totalorder %s27, %s28
      %p39 = scmp.eq.s32.totalorder %s19, 0
      %p40 = por %p38, %p39
      %p41 = scmp.ne.s32.totalorder %s27, %s28
      %p42 = scmp.eq.s32.totalorder %s20, 3
      %p43 = por %p41, %p42
      %p45 = scmp.ne.s32.totalorder %s28, %s44
      %p46 = scmp.eq.s32.totalorder %s20, 0
      %p47 = por %p45, %p46
      %s49 = sadd.s32 %s48, 1
      %p52 = scmp.eq.s32.totalorder %s14, 3
      %p53 = scmp.ne.s32.totalorder %s48, %s50
      %p54 = scmp.eq.s32.totalorder %s14, 0
      %p55 = por %p53, %p54
      %p56 = scmp.ne.s32.totalorder %s48, %s50
      %p57 = scmp.eq.s32.totalorder %s19, 3
      %p58 = por %p56, %p57
      %p59 = scmp.ne.s32.totalorder %s50, %s51
      %p60 = scmp.eq.s32.totalorder %s19, 0
      %p61 = por %p59, %p60
      %p62 = scmp.ne.s32.totalorder %s50, %s51
      %p63 = scmp.eq.s32.totalorder %s20, 3
      %p64 = por %p62, %p63
      %p66 = scmp.ne.s32.totalorder %s51, %s65
      %p67 = scmp.eq.s32.totalorder %s20, 0
      %p68 = por %p66, %p67
      %s70 = sadd.s32 %s69, 1
      %p73 = scmp.eq.s32.totalorder %s14, 3
      %p74 = scmp.ne.s32.totalorder %s69, %s71
      %p75 = scmp.eq.s32.totalorder %s14, 0
      %p76 = por %p74, %p75
      %p77 = scmp.ne.s32.totalorder %s69, %s71
      %p78 = scmp.eq.s32.totalorder %s19, 3
      %p79 = por %p77, %p78
      %p80 = scmp.ne.s32.totalorder %s71, %s72
      %p81 = scmp.eq.s32.totalorder %s19, 0
      %p82 = por %p80, %p81
      %p83 = scmp.ne.s32.totalorder %s71, %s72
      %p84 = scmp.eq.s32.totalorder %s20, 3
      %p85 = por %p83, %p84
      %p87 = scmp.ne.s32.totalorder %s72, %s86
      %p88 = scmp.eq.s32.totalorder %s20, 0
      %p89 = por %p87, %p88
      %s91 = sadd.s32 %s90, 1
      %p94 = scmp.eq.s32.totalorder %s14, 3
      %p95 = scmp.ne.s32.totalorder %s90, %s92
      %p96 = scmp.eq.s32.totalorder %s14, 0
      %p97 = por %p95, %p96
      %p98 = scmp.ne.s32.totalorder %s90, %s92
      %p99 = scmp.eq.s32.totalorder %s19, 3
      %p100 = por %p98, %p99
      %p101 = scmp.ne.s32.totalorder %s92, %s93
      %p102 = scmp.eq.s32.totalorder %s19, 0
      %p103 = por %p101, %p102
      %p104 = scmp.ne.s32.totalorder %s92, %s93
      %p105 = scmp.eq.s32.totalorder %s20, 3
      %p106 = por %p104, %p105
      %p108 = scmp.ne.s32.totalorder %s93, %s107
      %p109 = scmp.eq.s32.totalorder %s20, 0
      %p110 = por %p108, %p109
      %s112 = sadd.s32 %s111, 1
      %p115 = scmp.eq.s32.totalorder %s14, 3
      %p116 = scmp.ne.s32.totalorder %s111, %s113
      %p117 = scmp.eq.s32.totalorder %s14, 0
      %p118 = por %p116, %p117
      %p119 = scmp.ne.s32.totalorder %s111, %s113
      %p120 = scmp.eq.s32.totalorder %s19, 3
      %p121 = por %p119, %p120
      %p122 = scmp.ne.s32.totalorder %s113, %s114
      %p123 = scmp.eq.s32.totalorder %s19, 0
      %p124 = por %p122, %p123
      %p125 = scmp.ne.s32.totalorder %s113, %s114
      %p126 = scmp.eq.s32.totalorder %s20, 3
      %p127 = por %p125, %p126
      %p129 = scmp.ne.s32.totalorder %s114, %s128
      %p130 = scmp.eq.s32.totalorder %s20, 0
      %p131 = por %p129, %p130
      %s132 = ssub.s32 %s14, %s21
      %p133 = scmp.eq.s32.totalorder %s132, 0
      %s135 = sadd.s32 %s134, 1
      %s136 = scalar_select %p133, %s134, %s135
      %p139 = pneg %p133
      %p140 = scmp.eq.s32.totalorder %s14, 3
      %p141 = por %p139, %p140
      %p142 = scmp.ne.s32.totalorder %s134, %s137
      %p143 = scmp.eq.s32.totalorder %s14, 0
      %p144 = por %p142, %p143
      %p145 = scmp.ne.s32.totalorder %s134, %s137
      %p146 = scmp.eq.s32.totalorder %s19, 3
      %p147 = por %p145, %p146
      %p148 = scmp.ne.s32.totalorder %s137, %s138
      %p149 = scmp.eq.s32.totalorder %s19, 0
      %p150 = por %p148, %p149
      %p151 = scmp.ne.s32.totalorder %s137, %s138
      %p152 = scmp.eq.s32.totalorder %s20, 3
      %p153 = por %p151, %p152
      %p155 = scmp.ne.s32.totalorder %s138, %s154
      %p156 = scmp.eq.s32.totalorder %s20, 0
      %p157 = por %p155, %p156
      %p158 = scmp.le.s32.totalorder 1, %s14
      %p159 = scmp.lt.s32.totalorder %s14, 5
      %p160 = pnand %p158, %p159
      %p161 = pneg %p160
      // Predicated region
      $region9: #{tpu_custom_call.1} parent=5 // pred_check
        _
      $region10: #{tpu_custom_call.1} parent=5 // pred_check_branch
        %163 = sbr.rel (%p160) target = $region12
      $region11: #{tpu_custom_call.1} parent=5 // pred_region
        %s164 = ssub.s32 %s14, 1
        // Predicated region
        $region13: #{tpu_custom_call.1} parent=11 // pred_check
          %p165 = pneg %p61
        $region14: #{tpu_custom_call.1} parent=11 // pred_check_branch
          %167 = sbr.rel (%p165) target = $region16
        $region15: #{tpu_custom_call.1} parent=11 // pred_region
          _
        $region16: #{tpu_custom_call.1} parent=11 // pred_fallthru
          _
        // Predicated region
        $region17: #{tpu_custom_call.1} parent=11 // pred_check
          %p168 = pneg %p82
        $region18: #{tpu_custom_call.1} parent=11 // pred_check_branch
          %170 = sbr.rel (%p168) target = $region20
        $region19: #{tpu_custom_call.1} parent=11 // pred_region
          _
        $region20: #{tpu_custom_call.1} parent=11 // pred_fallthru
          _
        // Predicated region
        $region21: #{tpu_custom_call.1} parent=11 // pred_check
          %p171 = pneg %p103
        $region22: #{tpu_custom_call.1} parent=11 // pred_check_branch
          %173 = sbr.rel (%p171) target = $region24
        $region23: #{tpu_custom_call.1} parent=11 // pred_region
          _
        $region24: #{tpu_custom_call.1} parent=11 // pred_fallthru
          _
        // Predicated region
        $region25: #{tpu_custom_call.1} parent=11 // pred_check
          %p174 = pneg %p124
        $region26: #{tpu_custom_call.1} parent=11 // pred_check_branch
          %176 = sbr.rel (%p174) target = $region28
        $region27: #{tpu_custom_call.1} parent=11 // pred_region
          _
        $region28: #{tpu_custom_call.1} parent=11 // pred_fallthru
          _
      $region12: #{tpu_custom_call.1} parent=5 // pred_fallthru
        _
      %p177 = scmp.lt.s32.totalorder %s14, 4
      // Predicated region
      $region29: #{tpu_custom_call.1} parent=5 // pred_check
        %p178 = pneg %p177
      $region30: #{tpu_custom_call.1} parent=5 // pred_check_branch
        %180 = sbr.rel (%p178) target = $region32
      $region31: #{tpu_custom_call.1} parent=5 // pred_region
        // Predicated region
        $region33: #{tpu_custom_call.1} parent=31 // pred_check
          %p181 = pneg %p34
        $region34: #{tpu_custom_call.1} parent=31 // pred_check_branch
          %183 = sbr.rel (%p181) target = $region36
        $region35: #{tpu_custom_call.1} parent=31 // pred_region
          %s184 = smul.u32 16, %s14
          %p185 = scmp.lt.s32.totalorder %s184, 63
          %s186 = scalar_select %p185, %s184, 63
          %s187 = smul.addr %s186, 8
          %s188 = scalar_lea.vmem %s0, %s187
          %s189 = smul.u32 16, %s14
        $region36: #{tpu_custom_call.1} parent=31 // pred_fallthru
          _
      $region32: #{tpu_custom_call.1} parent=5 // pred_fallthru
        _
      %p190 = scmp.le.s32.totalorder 1, %s14
      %p191 = scmp.lt.s32.totalorder %s14, 5
      %p192 = pnand %p190, %p191
      %p193 = pneg %p192
      // Predicated region
      $region37: #{tpu_custom_call.1} parent=5 // pred_check
        _
      $region38: #{tpu_custom_call.1} parent=5 // pred_check_branch
        %195 = sbr.rel (%p192) target = $region40
      $region39: #{tpu_custom_call.1} parent=5 // pred_region
        %s196 = ssub.s32 %s14, 1
        %s197 = smul.u32 16, %s19
        %p198 = scmp.lt.s32.totalorder %s197, 63
        %s199 = scalar_select %p198, %s197, 63
        %s200 = smul.addr %s199, 8
        %s201 = scalar_lea.vmem %s0, %s200
        %p202 = pneg %p40
        %p203 = pneg %p37
        %p204 = pneg %p61
        %p205 = pneg %p58
        %p206 = pneg %p82
        %p207 = pneg %p79
        %p208 = pneg %p103
        %p209 = pneg %p100
        %p210 = pneg %p124
        %p211 = pneg %p121
        %p212 = pneg %p150
        %p213 = pneg %p147
        %s214 = sand.u32 %s137, 1
        %s215 = scalar_lea.sflag [#allocation3], %s214
        %s216 = sand.u32 %s137, 1
        %s217 = scalar_lea.vmem [#allocation2], %s216
        %s218 = smul.u32 16, %s19
        %p219 = scmp.lt.s32.totalorder %s218, 63
        %s220 = scalar_select %p219, %s218, 63
        %s221 = smul.addr %s220, 8
        %s222 = scalar_lea.vmem %s0, %s221
        %s223 = smul.u32 16, %s19
        %v225 = vld [vmem:[%s222] sm:$0xff]
        %v226 = vld [vmem:[%s222 + $0x8] sm:$0xff]
        %v227 = vld [vmem:[%s222 + $0x10] sm:$0xff]
        %v228 = vld [vmem:[%s222 + $0x18] sm:$0xff]
        %v229 = vld [vmem:[%s222 + $0x20] sm:$0xff]
        %v230 = vld [vmem:[%s222 + $0x28] sm:$0xff]
        %v231 = vld [vmem:[%s222 + $0x30] sm:$0xff]
        %v232 = vld [vmem:[%s222 + $0x38] sm:$0xff]
        %v233 = vld [vmem:[%s222 + $0x40] sm:$0xff]
        %v234 = vld [vmem:[%s222 + $0x48] sm:$0xff]
        %v235 = vld [vmem:[%s222 + $0x50] sm:$0xff]
        %v236 = vld [vmem:[%s222 + $0x58] sm:$0xff]
        %v237 = vld [vmem:[%s222 + $0x60] sm:$0xff]
        %v238 = vld [vmem:[%s222 + $0x68] sm:$0xff]
        %v239 = vld [vmem:[%s222 + $0x70] sm:$0xff]
        %v240 = vld [vmem:[%s222 + $0x78] sm:$0xff]
        %v241 = vpack.c.bf16 %v226, %v225
        %v242 = vpack.c.bf16 %v228, %v227
        %v243 = vpack.c.bf16 %v230, %v229
        %v244 = vpack.c.bf16 %v232, %v231
        %v245 = vpack.c.bf16 %v234, %v233
        %v246 = vpack.c.bf16 %v236, %v235
        %v247 = vpack.c.bf16 %v238, %v237
        %v248 = vpack.c.bf16 %v240, %v239
        %v249 = vld [vmem:[%s1] sm:$0xf]
        %v250 = vld [vmem:[%s1 + $0x4] sm:$0xf]
        %v251 = vld [vmem:[%s1 + $0x8] sm:$0xf]
        %v252 = vld [vmem:[%s1 + $0xc] sm:$0xf]
        %v253 = vld [vmem:[%s1 + $0x10] sm:$0xf]
        %v254 = vld [vmem:[%s1 + $0x14] sm:$0xf]
        %v255 = vld [vmem:[%s1 + $0x18] sm:$0xf]
        %v256 = vld [vmem:[%s1 + $0x1c] sm:$0xf]
        %v257 = vld [vmem:[%s1 + $0x20] sm:$0xf]
        %v258 = vld [vmem:[%s1 + $0x24] sm:$0xf]
        %v259 = vld [vmem:[%s1 + $0x28] sm:$0xf]
        %v260 = vld [vmem:[%s1 + $0x2c] sm:$0xf]
        %v261 = vld [vmem:[%s1 + $0x30] sm:$0xf]
        %v262 = vld [vmem:[%s1 + $0x34] sm:$0xf]
        %v263 = vld [vmem:[%s1 + $0x38] sm:$0xf]
        %v264 = vld [vmem:[%s1 + $0x3c] sm:$0xf]
        %v265 = vld [vmem:[%s1 + $0x40] sm:$0xf]
        %v266 = vld [vmem:[%s1 + $0x44] sm:$0xf]
        %v267 = vld [vmem:[%s1 + $0x48] sm:$0xf]
        %v268 = vld [vmem:[%s1 + $0x4c] sm:$0xf]
        %v269 = vld [vmem:[%s1 + $0x50] sm:$0xf]
        %v270 = vld [vmem:[%s1 + $0x54] sm:$0xf]
        %v271 = vld [vmem:[%s1 + $0x58] sm:$0xf]
        %v272 = vld [vmem:[%s1 + $0x5c] sm:$0xf]
        %v273 = vld [vmem:[%s1 + $0x60] sm:$0xf]
        %v274 = vld [vmem:[%s1 + $0x64] sm:$0xf]
        %v275 = vld [vmem:[%s1 + $0x68] sm:$0xf]
        %v276 = vld [vmem:[%s1 + $0x6c] sm:$0xf]
        %v277 = vld [vmem:[%s1 + $0x70] sm:$0xf]
        %v278 = vld [vmem:[%s1 + $0x74] sm:$0xf]
        %v279 = vld [vmem:[%s1 + $0x78] sm:$0xf]
        %v280 = vld [vmem:[%s1 + $0x7c] sm:$0xf]
        %v313 = vunpack.c.l.b16 %v249
        %v314 = vunpack.c.l.b16 %v250
        %v315 = vunpack.c.l.b16 %v251
        %v316 = vunpack.c.l.b16 %v252
        %v317 = vunpack.c.l.b16 %v253
        %v318 = vunpack.c.l.b16 %v254
        %v319 = vunpack.c.l.b16 %v255
        %v320 = vunpack.c.l.b16 %v256
        %v321 = vunpack.c.l.b16 %v257
        %v322 = vunpack.c.l.b16 %v258
        %v323 = vunpack.c.l.b16 %v259
        %v324 = vunpack.c.l.b16 %v260
        %v325 = vunpack.c.l.b16 %v261
        %v326 = vunpack.c.l.b16 %v262
        %v327 = vunpack.c.l.b16 %v263
        %v328 = vunpack.c.l.b16 %v264
        %v329 = vunpack.c.l.b16 %v265
        %v330 = vunpack.c.l.b16 %v266
        %v331 = vunpack.c.l.b16 %v267
        %v332 = vunpack.c.l.b16 %v268
        %v333 = vunpack.c.l.b16 %v269
        %v334 = vunpack.c.l.b16 %v270
        %v335 = vunpack.c.l.b16 %v271
        %v336 = vunpack.c.l.b16 %v272
        %v337 = vunpack.c.l.b16 %v273
        %v338 = vunpack.c.l.b16 %v274
        %v339 = vunpack.c.l.b16 %v275
        %v340 = vunpack.c.l.b16 %v276
        %v341 = vunpack.c.l.b16 %v277
        %v342 = vunpack.c.l.b16 %v278
        %v343 = vunpack.c.l.b16 %v279
        %v344 = vunpack.c.l.b16 %v280
        %v345 = vpack.c.b16 %v314, %v313
        %v346 = vpack.c.b16 %v316, %v315
        %v347 = vpack.c.b16 %v318, %v317
        %v348 = vpack.c.b16 %v320, %v319
        %v349 = vpack.c.b16 %v322, %v321
        %v350 = vpack.c.b16 %v324, %v323
        %v351 = vpack.c.b16 %v326, %v325
        %v352 = vpack.c.b16 %v328, %v327
        %v353 = vpack.c.b16 %v330, %v329
        %v354 = vpack.c.b16 %v332, %v331
        %v355 = vpack.c.b16 %v334, %v333
        %v356 = vpack.c.b16 %v336, %v335
        %v357 = vpack.c.b16 %v338, %v337
        %v358 = vpack.c.b16 %v340, %v339
        %v359 = vpack.c.b16 %v342, %v341
        %v360 = vpack.c.b16 %v344, %v343
        %vm361 = vcmask 261120
        %v363 = vsel %vm361, %v345, 0
        %v366 = vsel %vm361, %v346, 0
        %v369 = vsel %vm361, %v347, 0
        %v372 = vsel %vm361, %v348, 0
        %v375 = vsel %vm361, %v349, 0
        %v378 = vsel %vm361, %v350, 0
        %v381 = vsel %vm361, %v351, 0
        %v384 = vsel %vm361, %v352, 0
        %v387 = vsel %vm361, %v353, 0
        %v390 = vsel %vm361, %v354, 0
        %v393 = vsel %vm361, %v355, 0
        %v396 = vsel %vm361, %v356, 0
        %v399 = vsel %vm361, %v357, 0
        %v402 = vsel %vm361, %v358, 0
        %v405 = vsel %vm361, %v359, 0
        %v408 = vsel %vm361, %v360, 0
        %v411 = vsel %vm361, %v241, 0
        %v414 = vsel %vm361, %v242, 0
        %v417 = vsel %vm361, %v243, 0
        %v420 = vsel %vm361, %v244, 0
        %v423 = vsel %vm361, %v245, 0
        %v426 = vsel %vm361, %v246, 0
        %v429 = vsel %vm361, %v247, 0
        %v432 = vsel %vm361, %v248, 0
        %434 = vmatprep.subr.bf16.mxu0 0
        %435 = vmatpush1.bf16.xpose.msra.mxu0 %v411
        %436 = vmatprep.subr.bf16.mxu0 0
        %437 = vmatpush1.bf16.xpose.msra.mxu0 %v414
        %438 = vmatprep.subr.bf16.mxu0 0
        %439 = vmatpush1.bf16.xpose.msra.mxu0 %v417
        %440 = vmatprep.subr.bf16.mxu0 0
        %441 = vmatpush1.bf16.xpose.msra.mxu0 %v420
        %442 = vmatprep.subr.bf16.mxu0 0
        %443 = vmatpush1.bf16.xpose.msra.mxu0 %v423
        %444 = vmatprep.subr.bf16.mxu0 0
        %445 = vmatpush1.bf16.xpose.msra.mxu0 %v426
        %446 = vmatprep.subr.bf16.mxu0 0
        %447 = vmatpush1.bf16.xpose.msra.mxu0 %v429
        %448 = vmatprep.subr.bf16.mxu0 0
        %449 = vmatpush1.bf16.xpose.msra.mxu0 %v432
        %450 = vmatprep.subr.bf16.mxu0 0
        %451 = vmatpush1.bf16.xpose.msra.mxu0 0
        %452 = vmatprep.subr.bf16.mxu0 0
        %453 = vmatpush1.bf16.xpose.msra.mxu0 0
        %454 = vmatprep.subr.bf16.mxu0 0
        %455 = vmatpush1.bf16.xpose.msra.mxu0 0
        %456 = vmatprep.subr.bf16.mxu0 0
        %457 = vmatpush1.bf16.xpose.msra.mxu0 0
        %458 = vmatprep.subr.bf16.mxu0 0
        %459 = vmatpush1.bf16.xpose.msra.mxu0 0
        %460 = vmatprep.subr.bf16.mxu0 0
        %461 = vmatpush1.bf16.xpose.msra.mxu0 0
        %462 = vmatprep.subr.bf16.mxu0 0
        %463 = vmatpush1.bf16.xpose.msra.mxu0 0
        %464 = vmatprep.subr.bf16.mxu0 0
        %465 = vmatpush1.bf16.xpose.msra.mxu0 0
        %466 = vmatprep.mubr.bf16.mxu0 0
        %467 = vmatmul.mubr.bf16.gmra.mrb[0].mxu0 %v363
        %v468 = vpop.f32.mrb[0].mxu0
        %v469 = vadd.f32 0.0, %v468
        %v470 = vpop.f32.mrb[0].mxu0
        %v471 = vpop.f32.mrb[0].mxu0
        %v472 = vadd.f32 0.0, %v471
        %v473 = vpop.f32.mrb[0].mxu0
        %474 = vmatprep.mubr.bf16.mxu0 0
        %475 = vmatmul.mubr.bf16.gmra.mrb[0].mxu0 %v366
        %v476 = vpop.f32.mrb[0].mxu0
        %v477 = vadd.f32 0.0, %v476
        %v478 = vpop.f32.mrb[0].mxu0
        %v479 = vpop.f32.mrb[0].mxu0
        %v480 = vadd.f32 0.0, %v479
        %v481 = vpop.f32.mrb[0].mxu0
        %482 = vmatprep.mubr.bf16.mxu0 0
        %483 = vmatmul.mubr.bf16.gmra.mrb[0].mxu0 %v369
        %v484 = vpop.f32.mrb[0].mxu0
        %v485 = vadd.f32 0.0, %v484
        %v486 = vpop.f32.mrb[0].mxu0
        %v487 = vpop.f32.mrb[0].mxu0
        %v488 = vadd.f32 0.0, %v487
        %v489 = vpop.f32.mrb[0].mxu0
        %490 = vmatprep.mubr.bf16.mxu0 0
        %491 = vmatmul.mubr.bf16.gmra.mrb[0].mxu0 %v372
        %v492 = vpop.f32.mrb[0].mxu0
        %v493 = vadd.f32 0.0, %v492
        %v494 = vpop.f32.mrb[0].mxu0
        %v495 = vpop.f32.mrb[0].mxu0
        %v496 = vadd.f32 0.0, %v495
        %v497 = vpop.f32.mrb[0].mxu0
        %498 = vmatprep.mubr.bf16.mxu0 0
        %499 = vmatmul.mubr.bf16.gmra.mrb[0].mxu0 %v375
        %v500 = vpop.f32.mrb[0].mxu0
        %v501 = vadd.f32 0.0, %v500
        %v502 = vpop.f32.mrb[0].mxu0
        %v503 = vpop.f32.mrb[0].mxu0
        %v504 = vadd.f32 0.0, %v503
        %v505 = vpop.f32.mrb[0].mxu0
        %506 = vmatprep.mubr.bf16.mxu0 0
        %507 = vmatmul.mubr.bf16.gmra.mrb[0].mxu0 %v378
        %v508 = vpop.f32.mrb[0].mxu0
        %v509 = vadd.f32 0.0, %v508
        %v510 = vpop.f32.mrb[0].mxu0
        %v511 = vpop.f32.mrb[0].mxu0
        %v512 = vadd.f32 0.0, %v511
        %v513 = vpop.f32.mrb[0].mxu0
        %514 = vmatprep.mubr.bf16.mxu0 0
        %515 = vmatmul.mubr.bf16.gmra.mrb[0].mxu0 %v381
        %v516 = vpop.f32.mrb[0].mxu0
        %v517 = vadd.f32 0.0, %v516
        %v518 = vpop.f32.mrb[0].mxu0
        %v519 = vpop.f32.mrb[0].mxu0
        %v520 = vadd.f32 0.0, %v519
        %v521 = vpop.f32.mrb[0].mxu0
        %522 = vmatprep.mubr.bf16.mxu0 0
        %523 = vmatmul.mubr.bf16.gmra.mrb[0].mxu0 %v384
        %v524 = vpop.f32.mrb[0].mxu0
        %v525 = vadd.f32 0.0, %v524
        %v526 = vpop.f32.mrb[0].mxu0
        %v527 = vpop.f32.mrb[0].mxu0
        %v528 = vadd.f32 0.0, %v527
        %v529 = vpop.f32.mrb[0].mxu0
        %530 = vmatprep.mubr.bf16.mxu0 0
        %531 = vmatmul.mubr.bf16.gmra.mrb[0].mxu0 %v387
        %v532 = vpop.f32.mrb[0].mxu0
        %v533 = vadd.f32 0.0, %v532
        %v534 = vpop.f32.mrb[0].mxu0
        %v535 = vpop.f32.mrb[0].mxu0
        %v536 = vadd.f32 0.0, %v535
        %v537 = vpop.f32.mrb[0].mxu0
        %538 = vmatprep.mubr.bf16.mxu0 0
        %539 = vmatmul.mubr.bf16.gmra.mrb[0].mxu0 %v390
        %v540 = vpop.f32.mrb[0].mxu0
        %v541 = vadd.f32 0.0, %v540
        %v542 = vpop.f32.mrb[0].mxu0
        %v543 = vpop.f32.mrb[0].mxu0
        %v544 = vadd.f32 0.0, %v543
        %v545 = vpop.f32.mrb[0].mxu0
        %546 = vmatprep.mubr.bf16.mxu0 0
        %547 = vmatmul.mubr.bf16.gmra.mrb[0].mxu0 %v393
        %v548 = vpop.f32.mrb[0].mxu0
        %v549 = vadd.f32 0.0, %v548
        %v550 = vpop.f32.mrb[0].mxu0
        %v551 = vpop.f32.mrb[0].mxu0
        %v552 = vadd.f32 0.0, %v551
        %v553 = vpop.f32.mrb[0].mxu0
        %554 = vmatprep.mubr.bf16.mxu0 0
        %555 = vmatmul.mubr.bf16.gmra.mrb[0].mxu0 %v396
        %v556 = vpop.f32.mrb[0].mxu0
        %v557 = vadd.f32 0.0, %v556
        %v558 = vpop.f32.mrb[0].mxu0
        %v559 = vpop.f32.mrb[0].mxu0
        %v560 = vadd.f32 0.0, %v559
        %v561 = vpop.f32.mrb[0].mxu0
        %562 = vmatprep.mubr.bf16.mxu0 0
        %563 = vmatmul.mubr.bf16.gmra.mrb[0].mxu0 %v399
        %v564 = vpop.f32.mrb[0].mxu0
        %v565 = vadd.f32 0.0, %v564
        %v566 = vpop.f32.mrb[0].mxu0
        %v567 = vpop.f32.mrb[0].mxu0
        %v568 = vadd.f32 0.0, %v567
        %v569 = vpop.f32.mrb[0].mxu0
        %570 = vmatprep.mubr.bf16.mxu0 0
        %571 = vmatmul.mubr.bf16.gmra.mrb[0].mxu0 %v402
        %v572 = vpop.f32.mrb[0].mxu0
        %v573 = vadd.f32 0.0, %v572
        %v574 = vpop.f32.mrb[0].mxu0
        %v575 = vpop.f32.mrb[0].mxu0
        %v576 = vadd.f32 0.0, %v575
        %v577 = vpop.f32.mrb[0].mxu0
        %578 = vmatprep.mubr.bf16.mxu0 0
        %579 = vmatmul.mubr.bf16.gmra.mrb[0].mxu0 %v405
        %v580 = vpop.f32.mrb[0].mxu0
        %v581 = vadd.f32 0.0, %v580
        %v582 = vpop.f32.mrb[0].mxu0
        %v583 = vpop.f32.mrb[0].mxu0
        %v584 = vadd.f32 0.0, %v583
        %v585 = vpop.f32.mrb[0].mxu0
        %586 = vmatprep.mubr.bf16.mxu0 0
        %587 = vmatmul.mubr.bf16.gmra.mrb[0].mxu0 %v408
        %v588 = vpop.f32.mrb[0].mxu0
        %v589 = vadd.f32 0.0, %v588
        %v590 = vpop.f32.mrb[0].mxu0
        %v591 = vpop.f32.mrb[0].mxu0
        %v592 = vadd.f32 0.0, %v591
        %v593 = vpop.f32.mrb[0].mxu0
        %594 = vdwg.mxu0
        %v595 = vpack.c.bf16 %v472, %v469
        %v596 = vpack.c.bf16 %v480, %v477
        %v597 = vpack.c.bf16 %v488, %v485
        %v598 = vpack.c.bf16 %v496, %v493
        %v599 = vpack.c.bf16 %v504, %v501
        %v600 = vpack.c.bf16 %v512, %v509
        %v601 = vpack.c.bf16 %v520, %v517
        %v602 = vpack.c.bf16 %v528, %v525
        %v603 = vpack.c.bf16 %v536, %v533
        %v604 = vpack.c.bf16 %v544, %v541
        %v605 = vpack.c.bf16 %v552, %v549
        %v606 = vpack.c.bf16 %v560, %v557
        %v607 = vpack.c.bf16 %v568, %v565
        %v608 = vpack.c.bf16 %v576, %v573
        %v609 = vpack.c.bf16 %v584, %v581
        %v610 = vpack.c.bf16 %v592, %v589
        %v611 = vld [vmem:[%s2] sm:$0xff]
        %v612 = vld [vmem:[%s2 + $0x8] sm:$0xff]
        %v613 = vld [vmem:[%s2 + $0x10] sm:$0xff]
        %v614 = vld [vmem:[%s2 + $0x18] sm:$0xff]
        %v615 = vld [vmem:[%s2 + $0x20] sm:$0xff]
        %v616 = vld [vmem:[%s2 + $0x28] sm:$0xff]
        %v617 = vld [vmem:[%s2 + $0x30] sm:$0xff]
        %v618 = vld [vmem:[%s2 + $0x38] sm:$0xff]
        %v619 = vld [vmem:[%s2 + $0x40] sm:$0xff]
        %v620 = vld [vmem:[%s2 + $0x48] sm:$0xff]
        %v621 = vld [vmem:[%s2 + $0x50] sm:$0xff]
        %v622 = vld [vmem:[%s2 + $0x58] sm:$0xff]
        %v623 = vld [vmem:[%s2 + $0x60] sm:$0xff]
        %v624 = vld [vmem:[%s2 + $0x68] sm:$0xff]
        %v625 = vld [vmem:[%s2 + $0x70] sm:$0xff]
        %v626 = vld [vmem:[%s2 + $0x78] sm:$0xff]
        %v627 = vld [vmem:[%s2 + $0x80] sm:$0xff]
        %v628 = vld [vmem:[%s2 + $0x88] sm:$0xff]
        %v629 = vld [vmem:[%s2 + $0x90] sm:$0xff]
        %v630 = vld [vmem:[%s2 + $0x98] sm:$0xff]
        %v631 = vld [vmem:[%s2 + $0xa0] sm:$0xff]
        %v632 = vld [vmem:[%s2 + $0xa8] sm:$0xff]
        %v633 = vld [vmem:[%s2 + $0xb0] sm:$0xff]
        %v634 = vld [vmem:[%s2 + $0xb8] sm:$0xff]
        %v635 = vld [vmem:[%s2 + $0xc0] sm:$0xff]
        %v636 = vld [vmem:[%s2 + $0xc8] sm:$0xff]
        %v637 = vld [vmem:[%s2 + $0xd0] sm:$0xff]
        %v638 = vld [vmem:[%s2 + $0xd8] sm:$0xff]
        %v639 = vld [vmem:[%s2 + $0xe0] sm:$0xff]
        %v640 = vld [vmem:[%s2 + $0xe8] sm:$0xff]
        %v641 = vld [vmem:[%s2 + $0xf0] sm:$0xff]
        %v642 = vld [vmem:[%s2 + $0xf8] sm:$0xff]
        %v643 = vpack.c.bf16 %v612, %v611
        %v644 = vpack.c.bf16 %v614, %v613
        %v645 = vpack.c.bf16 %v616, %v615
        %v646 = vpack.c.bf16 %v618, %v617
        %v647 = vpack.c.bf16 %v620, %v619
        %v648 = vpack.c.bf16 %v622, %v621
        %v649 = vpack.c.bf16 %v624, %v623
        %v650 = vpack.c.bf16 %v626, %v625
        %v651 = vpack.c.bf16 %v628, %v627
        %v652 = vpack.c.bf16 %v630, %v629
        %v653 = vpack.c.bf16 %v632, %v631
        %v654 = vpack.c.bf16 %v634, %v633
        %v655 = vpack.c.bf16 %v636, %v635
        %v656 = vpack.c.bf16 %v638, %v637
        %v657 = vpack.c.bf16 %v640, %v639
        %v658 = vpack.c.bf16 %v642, %v641
        %660 = vset.pattern.permute.xlu0 0
        %661 = vperm.xlu0 %660, %v643
        %v662 = vpop.permute.xlu0 %661
        %665 = vset.pattern.permute.xlu0 0
        %666 = vperm.xlu0 %665, %v644
        %v667 = vpop.permute.xlu0 %666
        %670 = vset.pattern.permute.xlu0 0
        %671 = vperm.xlu0 %670, %v645
        %v672 = vpop.permute.xlu0 %671
        %675 = vset.pattern.permute.xlu0 0
        %676 = vperm.xlu0 %675, %v646
        %v677 = vpop.permute.xlu0 %676
        %680 = vset.pattern.permute.xlu0 0
        %681 = vperm.xlu0 %680, %v647
        %v682 = vpop.permute.xlu0 %681
        %685 = vset.pattern.permute.xlu0 0
        %686 = vperm.xlu0 %685, %v648
        %v687 = vpop.permute.xlu0 %686
        %690 = vset.pattern.permute.xlu0 0
        %691 = vperm.xlu0 %690, %v649
        %v692 = vpop.permute.xlu0 %691
        %695 = vset.pattern.permute.xlu0 0
        %696 = vperm.xlu0 %695, %v650
        %v697 = vpop.permute.xlu0 %696
        %700 = vset.pattern.permute.xlu0 0
        %701 = vperm.xlu0 %700, %v651
        %v702 = vpop.permute.xlu0 %701
        %705 = vset.pattern.permute.xlu0 0
        %706 = vperm.xlu0 %705, %v652
        %v707 = vpop.permute.xlu0 %706
        %710 = vset.pattern.permute.xlu0 0
        %711 = vperm.xlu0 %710, %v653
        %v712 = vpop.permute.xlu0 %711
        %715 = vset.pattern.permute.xlu0 0
        %716 = vperm.xlu0 %715, %v654
        %v717 = vpop.permute.xlu0 %716
        %720 = vset.pattern.permute.xlu0 0
        %721 = vperm.xlu0 %720, %v655
        %v722 = vpop.permute.xlu0 %721
        %725 = vset.pattern.permute.xlu0 0
        %726 = vperm.xlu0 %725, %v656
        %v727 = vpop.permute.xlu0 %726
        %730 = vset.pattern.permute.xlu0 0
        %731 = vperm.xlu0 %730, %v657
        %v732 = vpop.permute.xlu0 %731
        %735 = vset.pattern.permute.xlu0 0
        %736 = vperm.xlu0 %735, %v658
        %v737 = vpop.permute.xlu0 %736
        %v739 = vadd.bf16 %v595, %v662
        %v740 = vadd.bf16 %v596, %v667
        %v741 = vadd.bf16 %v597, %v672
        %v742 = vadd.bf16 %v598, %v677
        %v743 = vadd.bf16 %v599, %v682
        %v744 = vadd.bf16 %v600, %v687
        %v745 = vadd.bf16 %v601, %v692
        %v746 = vadd.bf16 %v602, %v697
        %v747 = vadd.bf16 %v603, %v702
        %v748 = vadd.bf16 %v604, %v707
        %v749 = vadd.bf16 %v605, %v712
        %v750 = vadd.bf16 %v606, %v717
        %v751 = vadd.bf16 %v607, %v722
        %v752 = vadd.bf16 %v608, %v727
        %v753 = vadd.bf16 %v609, %v732
        %v754 = vadd.bf16 %v610, %v737
        %v755 = vmax.bf16 %v739, 0
        %v756 = vmax.bf16 %v740, 0
        %v757 = vmax.bf16 %v741, 0
        %v758 = vmax.bf16 %v742, 0
        %v759 = vmax.bf16 %v743, 0
        %v760 = vmax.bf16 %v744, 0
        %v761 = vmax.bf16 %v745, 0
        %v762 = vmax.bf16 %v746, 0
        %v763 = vmax.bf16 %v747, 0
        %v764 = vmax.bf16 %v748, 0
        %v765 = vmax.bf16 %v749, 0
        %v766 = vmax.bf16 %v750, 0
        %v767 = vmax.bf16 %v751, 0
        %v768 = vmax.bf16 %v752, 0
        %v769 = vmax.bf16 %v753, 0
        %v770 = vmax.bf16 %v754, 0
        %v771 = vld [vmem:[%s3] sm:$0xff]
        %v772 = vld [vmem:[%s3 + $0x8] sm:$0xff]
        %v773 = vld [vmem:[%s3 + $0x10] sm:$0xff]
        %v774 = vld [vmem:[%s3 + $0x18] sm:$0xff]
        %v775 = vld [vmem:[%s3 + $0x20] sm:$0xff]
        %v776 = vld [vmem:[%s3 + $0x28] sm:$0xff]
        %v777 = vld [vmem:[%s3 + $0x30] sm:$0xff]
        %v778 = vld [vmem:[%s3 + $0x38] sm:$0xff]
        %v779 = vld [vmem:[%s3 + $0x40] sm:$0xff]
        %v780 = vld [vmem:[%s3 + $0x48] sm:$0xff]
        %v781 = vld [vmem:[%s3 + $0x50] sm:$0xff]
        %v782 = vld [vmem:[%s3 + $0x58] sm:$0xff]
        %v783 = vld [vmem:[%s3 + $0x60] sm:$0xff]
        %v784 = vld [vmem:[%s3 + $0x68] sm:$0xff]
        %v785 = vld [vmem:[%s3 + $0x70] sm:$0xff]
        %v786 = vld [vmem:[%s3 + $0x78] sm:$0xff]
        %v787 = vld [vmem:[%s4] sm:$0xff]
        %v788 = vld [vmem:[%s4 + $0x8] sm:$0xff]
        %v789 = vld [vmem:[%s4 + $0x10] sm:$0xff]
        %v790 = vld [vmem:[%s4 + $0x18] sm:$0xff]
        %v791 = vld [vmem:[%s4 + $0x20] sm:$0xff]
        %v792 = vld [vmem:[%s4 + $0x28] sm:$0xff]
        %v793 = vld [vmem:[%s4 + $0x30] sm:$0xff]
        %v794 = vld [vmem:[%s4 + $0x38] sm:$0xff]
        %v795 = vld [vmem:[%s4 + $0x40] sm:$0xff]
        %v796 = vld [vmem:[%s4 + $0x48] sm:$0xff]
        %v797 = vld [vmem:[%s4 + $0x50] sm:$0xff]
        %v798 = vld [vmem:[%s4 + $0x58] sm:$0xff]
        %v799 = vld [vmem:[%s4 + $0x60] sm:$0xff]
        %v800 = vld [vmem:[%s4 + $0x68] sm:$0xff]
        %v801 = vld [vmem:[%s4 + $0x70] sm:$0xff]
        %v802 = vld [vmem:[%s4 + $0x78] sm:$0xff]
        %804 = vset.pattern.permute.xlu0 0
        %805 = vperm.xlu0 %804, %v787
        %v806 = vpop.permute.xlu0 %805
        %809 = vset.pattern.permute.xlu0 0
        %810 = vperm.xlu0 %809, %v788
        %v811 = vpop.permute.xlu0 %810
        %814 = vset.pattern.permute.xlu0 0
        %815 = vperm.xlu0 %814, %v789
        %v816 = vpop.permute.xlu0 %815
        %819 = vset.pattern.permute.xlu0 0
        %820 = vperm.xlu0 %819, %v790
        %v821 = vpop.permute.xlu0 %820
        %824 = vset.pattern.permute.xlu0 0
        %825 = vperm.xlu0 %824, %v791
        %v826 = vpop.permute.xlu0 %825
        %829 = vset.pattern.permute.xlu0 0
        %830 = vperm.xlu0 %829, %v792
        %v831 = vpop.permute.xlu0 %830
        %834 = vset.pattern.permute.xlu0 0
        %835 = vperm.xlu0 %834, %v793
        %v836 = vpop.permute.xlu0 %835
        %839 = vset.pattern.permute.xlu0 0
        %840 = vperm.xlu0 %839, %v794
        %v841 = vpop.permute.xlu0 %840
        %844 = vset.pattern.permute.xlu0 0
        %845 = vperm.xlu0 %844, %v795
        %v846 = vpop.permute.xlu0 %845
        %849 = vset.pattern.permute.xlu0 0
        %850 = vperm.xlu0 %849, %v796
        %v851 = vpop.permute.xlu0 %850
        %854 = vset.pattern.permute.xlu0 0
        %855 = vperm.xlu0 %854, %v797
        %v856 = vpop.permute.xlu0 %855
        %859 = vset.pattern.permute.xlu0 0
        %860 = vperm.xlu0 %859, %v798
        %v861 = vpop.permute.xlu0 %860
        %864 = vset.pattern.permute.xlu0 0
        %865 = vperm.xlu0 %864, %v799
        %v866 = vpop.permute.xlu0 %865
        %869 = vset.pattern.permute.xlu0 0
        %870 = vperm.xlu0 %869, %v800
        %v871 = vpop.permute.xlu0 %870
        %874 = vset.pattern.permute.xlu0 0
        %875 = vperm.xlu0 %874, %v801
        %v876 = vpop.permute.xlu0 %875
        %879 = vset.pattern.permute.xlu0 0
        %880 = vperm.xlu0 %879, %v802
        %v881 = vpop.permute.xlu0 %880
        %v899 = vunpack.c.l.b16 %v771
        %v900 = vunpack.c.h.b16 %v771
        %v901 = vunpack.c.l.b16 %v772
        %v902 = vunpack.c.h.b16 %v772
        %v903 = vunpack.c.l.b16 %v773
        %v904 = vunpack.c.h.b16 %v773
        %v905 = vunpack.c.l.b16 %v774
        %v906 = vunpack.c.h.b16 %v774
        %v907 = vunpack.c.l.b16 %v775
        %v908 = vunpack.c.h.b16 %v775
        %v909 = vunpack.c.l.b16 %v776
        %v910 = vunpack.c.h.b16 %v776
        %v911 = vunpack.c.l.b16 %v777
        %v912 = vunpack.c.h.b16 %v777
        %v913 = vunpack.c.l.b16 %v778
        %v914 = vunpack.c.h.b16 %v778
        %v915 = vunpack.c.l.b16 %v779
        %v916 = vunpack.c.h.b16 %v779
        %v917 = vunpack.c.l.b16 %v780
        %v918 = vunpack.c.h.b16 %v780
        %v919 = vunpack.c.l.b16 %v781
        %v920 = vunpack.c.h.b16 %v781
        %v921 = vunpack.c.l.b16 %v782
        %v922 = vunpack.c.h.b16 %v782
        %v923 = vunpack.c.l.b16 %v783
        %v924 = vunpack.c.h.b16 %v783
        %v925 = vunpack.c.l.b16 %v784
        %v926 = vunpack.c.h.b16 %v784
        %v927 = vunpack.c.l.b16 %v785
        %v928 = vunpack.c.h.b16 %v785
        %v929 = vunpack.c.l.b16 %v786
        %v930 = vunpack.c.h.b16 %v786
        %v931 = vpack.c.b16 %v901, %v899
        %v932 = vpack.c.b16 %v902, %v900
        %v933 = vpack.c.b16 %v905, %v903
        %v934 = vpack.c.b16 %v906, %v904
        %v935 = vpack.c.b16 %v909, %v907
        %v936 = vpack.c.b16 %v910, %v908
        %v937 = vpack.c.b16 %v913, %v911
        %v938 = vpack.c.b16 %v914, %v912
        %v939 = vpack.c.b16 %v917, %v915
        %v940 = vpack.c.b16 %v918, %v916
        %v941 = vpack.c.b16 %v921, %v919
        %v942 = vpack.c.b16 %v922, %v920
        %v943 = vpack.c.b16 %v925, %v923
        %v944 = vpack.c.b16 %v926, %v924
        %v945 = vpack.c.b16 %v929, %v927
        %v946 = vpack.c.b16 %v930, %v928
        %963 = vmatprep.subr.bf16.mxu0 0
        %964 = vmatpush1.bf16.msra.mxu0 %v755
        %965 = vmatprep.subr.bf16.mxu0 0
        %966 = vmatpush1.bf16.msra.mxu0 %v756
        %967 = vmatprep.subr.bf16.mxu0 0
        %968 = vmatpush1.bf16.msra.mxu0 %v757
        %969 = vmatprep.subr.bf16.mxu0 0
        %970 = vmatpush1.bf16.msra.mxu0 %v758
        %971 = vmatprep.subr.bf16.mxu0 0
        %972 = vmatpush1.bf16.msra.mxu0 %v759
        %973 = vmatprep.subr.bf16.mxu0 0
        %974 = vmatpush1.bf16.msra.mxu0 %v760
        %975 = vmatprep.subr.bf16.mxu0 0
        %976 = vmatpush1.bf16.msra.mxu0 %v761
        %977 = vmatprep.subr.bf16.mxu0 0
        %978 = vmatpush1.bf16.msra.mxu0 %v762
        %979 = vmatprep.subr.bf16.mxu0 0
        %980 = vmatpush1.bf16.msra.mxu0 %v763
        %981 = vmatprep.subr.bf16.mxu0 0
        %982 = vmatpush1.bf16.msra.mxu0 %v764
        %983 = vmatprep.subr.bf16.mxu0 0
        %984 = vmatpush1.bf16.msra.mxu0 %v765
        %985 = vmatprep.subr.bf16.mxu0 0
        %986 = vmatpush1.bf16.msra.mxu0 %v766
        %987 = vmatprep.subr.bf16.mxu0 0
        %988 = vmatpush1.bf16.msra.mxu0 %v767
        %989 = vmatprep.subr.bf16.mxu0 0
        %990 = vmatpush1.bf16.msra.mxu0 %v768
        %991 = vmatprep.subr.bf16.mxu0 0
        %992 = vmatpush1.bf16.msra.mxu0 %v769
        %993 = vmatprep.subr.bf16.mxu0 0
        %994 = vmatpush1.bf16.msra.mxu0 %v770
        %995 = vmatprep.mubr.bf16.mxu0 %v932
        %996 = vmatmul.mubr.bf16.gmra.mrb[0].mxu0 %v931
        %v997 = vpop.f32.mrb[0].mxu0
        %v998 = vadd.f32 %v806, %v997
        %v999 = vpop.f32.mrb[0].mxu0
        %v1000 = vpop.f32.mrb[0].mxu0
        %v1001 = vadd.f32 %v811, %v1000
        %v1002 = vpop.f32.mrb[0].mxu0
        %1003 = vmatprep.mubr.bf16.mxu0 %v934
        %1004 = vmatmul.mubr.bf16.gmra.mrb[0].mxu0 %v933
        %v1005 = vpop.f32.mrb[0].mxu0
        %v1006 = vadd.f32 %v816, %v1005
        %v1007 = vpop.f32.mrb[0].mxu0
        %v1008 = vpop.f32.mrb[0].mxu0
        %v1009 = vadd.f32 %v821, %v1008
        %v1010 = vpop.f32.mrb[0].mxu0
        %1011 = vmatprep.mubr.bf16.mxu0 %v936
        %1012 = vmatmul.mubr.bf16.gmra.mrb[0].mxu0 %v935
        %v1013 = vpop.f32.mrb[0].mxu0
        %v1014 = vadd.f32 %v826, %v1013
        %v1015 = vpop.f32.mrb[0].mxu0
        %v1016 = vpop.f32.mrb[0].mxu0
        %v1017 = vadd.f32 %v831, %v1016
        %v1018 = vpop.f32.mrb[0].mxu0
        %1019 = vmatprep.mubr.bf16.mxu0 %v938
        %1020 = vmatmul.mubr.bf16.gmra.mrb[0].mxu0 %v937
        %v1021 = vpop.f32.mrb[0].mxu0
        %v1022 = vadd.f32 %v836, %v1021
        %v1023 = vpop.f32.mrb[0].mxu0
        %v1024 = vpop.f32.mrb[0].mxu0
        %v1025 = vadd.f32 %v841, %v1024
        %v1026 = vpop.f32.mrb[0].mxu0
        %1027 = vmatprep.mubr.bf16.mxu0 %v940
        %1028 = vmatmul.mubr.bf16.gmra.mrb[0].mxu0 %v939
        %v1029 = vpop.f32.mrb[0].mxu0
        %v1030 = vadd.f32 %v846, %v1029
        %v1031 = vpop.f32.mrb[0].mxu0
        %v1032 = vpop.f32.mrb[0].mxu0
        %v1033 = vadd.f32 %v851, %v1032
        %v1034 = vpop.f32.mrb[0].mxu0
        %1035 = vmatprep.mubr.bf16.mxu0 %v942
        %1036 = vmatmul.mubr.bf16.gmra.mrb[0].mxu0 %v941
        %v1037 = vpop.f32.mrb[0].mxu0
        %v1038 = vadd.f32 %v856, %v1037
        %v1039 = vpop.f32.mrb[0].mxu0
        %v1040 = vpop.f32.mrb[0].mxu0
        %v1041 = vadd.f32 %v861, %v1040
        %v1042 = vpop.f32.mrb[0].mxu0
        %1043 = vmatprep.mubr.bf16.mxu0 %v944
        %1044 = vmatmul.mubr.bf16.gmra.mrb[0].mxu0 %v943
        %v1045 = vpop.f32.mrb[0].mxu0
        %v1046 = vadd.f32 %v866, %v1045
        %v1047 = vpop.f32.mrb[0].mxu0
        %v1048 = vpop.f32.mrb[0].mxu0
        %v1049 = vadd.f32 %v871, %v1048
        %v1050 = vpop.f32.mrb[0].mxu0
        %1051 = vmatprep.mubr.bf16.mxu0 %v946
        %1052 = vmatmul.mubr.bf16.gmra.mrb[0].mxu0 %v945
        %v1053 = vpop.f32.mrb[0].mxu0
        %v1054 = vadd.f32 %v876, %v1053
        %v1055 = vpop.f32.mrb[0].mxu0
        %v1056 = vpop.f32.mrb[0].mxu0
        %v1057 = vadd.f32 %v881, %v1056
        %v1058 = vpop.f32.mrb[0].mxu0
        %1059 = vdwg.mxu0
        %v1060 = vmul.f32 %v998, %v998
        %v1061 = vmul.f32 %v1001, %v1001
        %v1062 = vmul.f32 %v1006, %v1006
        %v1063 = vmul.f32 %v1009, %v1009
        %v1064 = vmul.f32 %v1014, %v1014
        %v1065 = vmul.f32 %v1017, %v1017
        %v1066 = vmul.f32 %v1022, %v1022
        %v1067 = vmul.f32 %v1025, %v1025
        %v1068 = vmul.f32 %v1030, %v1030
        %v1069 = vmul.f32 %v1033, %v1033
        %v1070 = vmul.f32 %v1038, %v1038
        %v1071 = vmul.f32 %v1041, %v1041
        %v1072 = vmul.f32 %v1046, %v1046
        %v1073 = vmul.f32 %v1049, %v1049
        %v1074 = vmul.f32 %v1054, %v1054
        %v1075 = vmul.f32 %v1057, %v1057
        %v1076 = vadd.f32 %v1060, %v1061
        %v1077 = vadd.f32 %v1076, %v1062
        %v1078 = vadd.f32 %v1077, %v1063
        %v1079 = vadd.f32 %v1078, %v1064
        %v1080 = vadd.f32 %v1079, %v1065
        %v1081 = vadd.f32 %v1080, %v1066
        %v1082 = vadd.f32 %v1081, %v1067
        %v1083 = vadd.f32 %v1082, %v1068
        %v1084 = vadd.f32 %v1083, %v1069
        %v1085 = vadd.f32 %v1084, %v1070
        %v1086 = vadd.f32 %v1085, %v1071
        %v1087 = vadd.f32 %v1086, %v1072
        %v1088 = vadd.f32 %v1087, %v1073
        %v1089 = vadd.f32 %v1088, %v1074
        %v1090 = vadd.f32 %v1089, %v1075
        %v1091 = vrot.slane %v1090, 4
        %v1092 = vadd.f32 %v1090, %v1091
        %v1093 = vrot.slane %v1092, 2
        %v1094 = vadd.f32 %v1092, %v1093
        %v1095 = vrot.slane %v1094, 1
        %v1096 = vadd.f32 %v1094, %v1095
        %v1097 = vrcp.pop 128.0
        %v1098 = vmul.f32 %v1096, %v1097
        %1099 = vst [vmem:[%s217] sm:$0x1] %v1098
        %s1100 = sand.u32 %s137, 1
        %s1101 = scalar_lea.sflag [#allocation3], %s1100
        %s1102 = sand.u32 %s137, 1
        %s1103 = scalar_lea.vmem [#allocation2], %s1102
        // Predicated region
        $region41: #{tpu_custom_call.1} parent=39 // pred_check
          %p1104 = pneg %p147
        $region42: #{tpu_custom_call.1} parent=39 // pred_check_branch
          %1106 = sbr.rel (%p1104) target = $region44
        $region43: #{tpu_custom_call.1} parent=39 // pred_region
          %s1108 = ssub.s32 16, 16
          %1109 = vsyncadd %s1101, %s1108
          %s1110 = smul.addr %s19, 16
          %s1111 = scalar_lea.hbm %s5, %s1110
          %s1113 = sshll.u32 %s1103, 4
          %s1114 = int_to_ptr.vmem [resolvable:$true] %s1113
          %1116 = dma.vmem_to_hbm [thread:$0]  %s1114, 16, %s1111, %s1101
        $region44: #{tpu_custom_call.1} parent=39 // pred_fallthru
          _
      $region40: #{tpu_custom_call.1} parent=5 // pred_fallthru
        _
      %p1117 = scmp.le.s32.totalorder 2, %s14
      // Predicated region
      $region45: #{tpu_custom_call.1} parent=5 // pred_check
        %p1118 = pneg %p1117
      $region46: #{tpu_custom_call.1} parent=5 // pred_check_branch
        %1120 = sbr.rel (%p1118) target = $region48
      $region47: #{tpu_custom_call.1} parent=5 // pred_region
        %s1121 = ssub.s32 %s14, 2
        // Predicated region
        $region49: #{tpu_custom_call.1} parent=47 // pred_check
          %p1122 = pneg %p153
        $region50: #{tpu_custom_call.1} parent=47 // pred_check_branch
          %1124 = sbr.rel (%p1122) target = $region52
        $region51: #{tpu_custom_call.1} parent=47 // pred_region
          %s1125 = sand.u32 %s138, 1
          %s1126 = scalar_lea.sflag [#allocation3], %s1125
          %s1127 = sand.u32 %s138, 1
          %s1128 = scalar_lea.vmem [#allocation2], %s1127
          %1129 = dma.done %s1126, 16
        $region52: #{tpu_custom_call.1} parent=47 // pred_fallthru
          _
      $region48: #{tpu_custom_call.1} parent=5 // pred_fallthru
        _
    $region6: #{tpu_custom_call.1} parent=1 // loop_footer
      %s18 = sadd.s32 1, %s14
    $region7: #{tpu_custom_call.1} parent=1 // loop_footer_branch
      %13 = sbr.rel target = $region3
    $region8: #{tpu_custom_call.1} parent=1 // loop_exit
      _
    %1130 = vsyncpa [#allocation3], 1
    %s1131 = scalar_lea.sflag [#allocation3], 1
    %1132 = vsyncpa %s1131, 1

</llo_original>
